<compile_context>
chip_gen: v7x
topology: tpu7x:2x2x1
jax: 0.10.0
libtpu: 0.0.40
codegen_flags: <defaults>
</compile_context>

<pallas_src>
import math
from functools import partial

import jax
import jax.numpy as jnp
from jax.experimental import pallas as pl
from jax.experimental.pallas import tpu as pltpu


def _grad_preproc_kernel(x_ref, o_ref, *, inv_p, thresh, exp_p, eps):
    x = x_ref[...]                                   # (tile_n, D) f32
    absx = jnp.abs(x)
    mask = absx > thresh
    # Selects instead of indicator arithmetic: no bool->f32 cast, no divide.
    x1 = jnp.where(mask, jnp.log(absx + eps) * inv_p, -1.0)
    # On the taken branch |x| > exp(-p) > 0, so sign(x) == (x > 0 ? 1 : -1).
    x2 = jnp.where(mask, jnp.where(x > 0, 1.0, -1.0), exp_p * x)

    d = x.shape[-1]
    o_ref[:, :d] = x1.astype(o_ref.dtype)            # dense store at offset 0
    o_ref[:, d:] = x2.astype(o_ref.dtype)            # masked store if D % 128 != 0


def _round_up(v, m):
    return ((v + m - 1) // m) * m


def _vmem_budget_bytes():
    """Generation-aware scoped-VMEM budget per TensorCore."""
    try:
        kind = jax.devices()[0].device_kind.lower()
    except Exception:
        kind = ""
    if "v7" in kind:
        # v7x: 64 MiB physical per TC -> keep pipelined blocks <= ~40 MiB.
        return 40 * 1024 * 1024
    # v5e / v6e: 128 MiB physical (default scoped limit is only 16/32 MiB).
    return 96 * 1024 * 1024


def _auto_tile_rows(N, hbm_row_bytes, vmem_row_bytes, vmem_budget):
    # Target ~8 MiB of HBM traffic per grid step.
    tile = max(8, (8 * 1024 * 1024) // hbm_row_bytes)
    # Keep double-buffered (in + out) blocks under ~80% of the VMEM budget.
    tile = min(tile, max(8, (vmem_budget * 2 // 5) // vmem_row_bytes))
    tile = max(8, min(tile, N))
    # Keep >= 2 grid steps so the "parallel" axis can shard across v7x's two
    # TensorCores; prefer >= 4 steps when each step still moves >= ~4 MiB.
    if N > 8:
        quarter = max(8, _round_up(pl.cdiv(N, 4), 8))
        half = max(8, _round_up(pl.cdiv(N, 2), 8))
        if quarter * hbm_row_bytes >= 4 * 1024 * 1024:
            tile = min(tile, quarter)
        else:
            tile = min(tile, half)
    tile = max(8, _round_up(tile, 8))
    # Prefer an even step count (balanced megacore split).
    steps = pl.cdiv(N, tile)
    if steps > 1 and steps % 2 == 1:
        tile2 = max(8, _round_up(pl.cdiv(N, steps + 1), 8))
        if pl.cdiv(N, tile2) % 2 == 0:
            tile = tile2
    return tile


def gradient_preprocessor(x, p=10.0, eps=1e-6, *, tile_n=None):
    """Pallas TPU GradientPreprocessor.forward for 2-D x.

    x: (N, D) float32 -> (N, 2*D); columns [0, D) = x1, [D, 2*D) = x2,
    identical to torch.cat((x1, x2), dim=1).
    """
    N, D = x.shape

    hbm_row_bytes = 12 * D                                       # 4B in + 8B out per elem
    # VMEM tiles lane-pad the minor dim to 128; account for it (matters for tiny D).
    vmem_row_bytes = 4 * (_round_up(D, 128) + _round_up(2 * D, 128))
    vmem_budget = _vmem_budget_bytes()

    if tile_n is None:
        tile_n = _auto_tile_rows(N, hbm_row_bytes, vmem_row_bytes, vmem_budget)
    else:
        tile_n = max(8, _round_up(min(tile_n, N), 8))

    steps = pl.cdiv(N, tile_n)
    vmem_needed = 2 * tile_n * vmem_row_bytes                    # double-buffered in+out
    vmem_limit = int(min(vmem_budget, max(32 * 1024 * 1024, vmem_needed + (8 << 20))))

    kernel = partial(
        _grad_preproc_kernel,
        inv_p=1.0 / p,
        thresh=math.exp(-p),
        exp_p=math.exp(p),
        eps=eps,
    )

    return pl.pallas_call(
        kernel,
        out_shape=jax.ShapeDtypeStruct((N, 2 * D), x.dtype),
        grid_spec=pltpu.PrefetchScalarGridSpec(
            num_scalar_prefetch=0,
            grid=(steps,),
            in_specs=[pl.BlockSpec((tile_n, D), lambda i: (i, 0))],
            out_specs=pl.BlockSpec((tile_n, 2 * D), lambda i: (i, 0)),
        ),
        compiler_params=pltpu.CompilerParams(
            dimension_semantics=("parallel",),      # shard row tiles across v7x's 2 TCs
            vmem_limit_bytes=vmem_limit,
        ),
        cost_estimate=pl.CostEstimate(
            flops=6 * N * D,
            transcendentals=N * D,
            bytes_accessed=12 * N * D,
        ),
    )(x)


def _reference(x, p=10.0, eps=1e-6):
    indicator = (jnp.abs(x) > math.exp(-p)).astype(x.dtype)
    x1 = jnp.log(jnp.abs(x) + eps) / p * indicator - (1 - indicator)
    x2 = jnp.sign(x) * indicator + math.exp(p) * x * (1 - indicator)
    return jnp.concatenate((x1, x2), axis=1)


if __name__ == "__main__":
    key = jax.random.PRNGKey(0)
    k1, k2 = jax.random.split(key)

    # Case 1: lane-aligned D, explicit small tile -> 3-step grid with a partial
    # tail block (40 = 16 + 16 + 8).
    N1, D1 = 40, 128
    xa = jax.random.normal(k1, (N1, D1), dtype=jnp.float32) * 0.1
    xa = xa.at[:, ::7].multiply(1e-6)                # exercise the small-|x| branch
    out1 = jax.block_until_ready(gradient_preprocessor(xa, p=10.0, eps=1e-6, tile_n=16))
    ref1 = _reference(xa, p=10.0, eps=1e-6)
    assert out1.shape == (N1, 2 * D1), out1.shape
    assert jnp.allclose(out1, ref1, atol=1e-5, rtol=1e-5), "case 1 mismatch vs reference"

    # Case 2: D not a multiple of 128 (lane-masked x2 store at column offset D),
    # auto tiling -> 2-step grid.
    N2, D2 = 16, 96
    xb = jax.random.normal(k2, (N2, D2), dtype=jnp.float32) * 0.05
    xb = xb.at[::3, ::5].multiply(1e-7)
    out2 = jax.block_until_ready(gradient_preprocessor(xb, p=10.0, eps=1e-6))
    ref2 = _reference(xb, p=10.0, eps=1e-6)
    assert out2.shape == (N2, 2 * D2), out2.shape
    assert jnp.allclose(out2, ref2, atol=1e-5, rtol=1e-5), "case 2 mismatch vs reference"

    print("KERNEL_OK")
</pallas_src>

<mosaic_0001>
module attributes {stable_mosaic.version = 11 : i64} {
  func.func @_grad_preproc_kernel(%arg0: i32, %arg1: memref<16x128xf32, #tpu.memory_space<vmem>>, %arg2: memref<16x256xf32, #tpu.memory_space<vmem>>) attributes {dimension_semantics = [#tpu.dimension_semantics<parallel>], iteration_bounds = array<i64: 3>, scalar_prefetch = 0 : i64, scratch_operands = 0 : i64, tpu.core_type = #tpu.core_type<tc>, window_params = [{transform_indices = @transform_0, window_bounds = array<i64: 16, 128>}, {transform_indices = @transform_1, window_bounds = array<i64: 16, 256>}]} {
    %c0 = arith.constant 0 : index
    %c0_0 = arith.constant 0 : index
    %0 = vector.load %arg1[%c0, %c0_0] : memref<16x128xf32, #tpu.memory_space<vmem>>, vector<16x128xf32>
    %1 = math.absf %0 : vector<16x128xf32>
    %cst = arith.constant 4.5399931E-5 : f32
    %2 = vector.broadcast %cst : f32 to vector<16x128xf32>
    %3 = arith.cmpf ogt, %1, %2 : vector<16x128xf32>
    %cst_1 = arith.constant 9.99999997E-7 : f32
    %4 = vector.broadcast %cst_1 : f32 to vector<16x128xf32>
    %5 = arith.addf %1, %4 : vector<16x128xf32>
    %6 = math.log %5 : vector<16x128xf32>
    %cst_2 = arith.constant 1.000000e-01 : f32
    %7 = vector.broadcast %cst_2 : f32 to vector<16x128xf32>
    %8 = arith.mulf %6, %7 : vector<16x128xf32>
    %cst_3 = arith.constant -1.000000e+00 : f32
    %9 = vector.broadcast %cst_3 : f32 to vector<16x128xf32>
    %10 = arith.select %3, %8, %9 : vector<16x128xi1>, vector<16x128xf32>
    %cst_4 = arith.constant 0.000000e+00 : f32
    %11 = vector.broadcast %cst_4 : f32 to vector<16x128xf32>
    %12 = arith.cmpf ogt, %0, %11 : vector<16x128xf32>
    %cst_5 = arith.constant 1.000000e+00 : f32
    %cst_6 = arith.constant -1.000000e+00 : f32
    %13 = vector.broadcast %cst_5 : f32 to vector<16x128xf32>
    %14 = vector.broadcast %cst_6 : f32 to vector<16x128xf32>
    %15 = arith.select %12, %13, %14 : vector<16x128xi1>, vector<16x128xf32>
    %cst_7 = arith.constant 22026.4648 : f32
    %16 = vector.broadcast %cst_7 : f32 to vector<16x128xf32>
    %17 = arith.mulf %16, %0 : vector<16x128xf32>
    %18 = arith.select %3, %15, %17 : vector<16x128xi1>, vector<16x128xf32>
    %c0_8 = arith.constant 0 : index
    %c0_9 = arith.constant 0 : index
    %19 = vector.load %arg2[%c0_8, %c0_9] : memref<16x256xf32, #tpu.memory_space<vmem>>, vector<16x128xf32>
    tpu.vector_store %arg2[%c0_8, %c0_9], %10 {strides = array<i32>} : memref<16x256xf32, #tpu.memory_space<vmem>>, vector<16x128xf32>,
    %c0_10 = arith.constant 0 : index
    %c128 = arith.constant 128 : index
    %20 = vector.load %arg2[%c0_10, %c128] : memref<16x256xf32, #tpu.memory_space<vmem>>, vector<16x128xf32>
    tpu.vector_store %arg2[%c0_10, %c128], %18 {strides = array<i32>} : memref<16x256xf32, #tpu.memory_space<vmem>>, vector<16x128xf32>,
    return
  }
  func.func @transform_0(%arg0: i32) -> (i32, i32) {
    %c0_i32 = arith.constant 0 : i32
    %c0_i32_0 = arith.constant 0 : i32
    return %arg0, %c0_i32 : i32, i32
  }
  func.func @transform_1(%arg0: i32) -> (i32, i32) {
    %c0_i32 = arith.constant 0 : i32
    %c0_i32_0 = arith.constant 0 : i32
    return %arg0, %c0_i32 : i32, i32
  }
}

</mosaic_0001>

<llo_original>
// kernel: tpu_custom_call.1
$region0: #{tpu_custom_call.1}
  #allocation0 [shape = 'u32[]', space=smem, size = 0x4, offset = 0x4, fixed_abs, tag = 'smem constant byte address 0x4 - core index']
  #allocation1 [shape = 'u32[144,128]{1,0:T(1,128)}', space=vmem, size = 0x12000, scoped, tag = 'internal scratch']
  %s0 = inlined_call_operand.hbm [shape: f32[40,128], index: 0, kind: input, shape index: {}]
  %s1 = inlined_call_operand.hbm [shape: f32[40,256], index: 1, kind: output, shape index: {}]
  %s2 = sld [smem:[#allocation0]]
  $region41: #{tpu_custom_call.1} parent=0
    _
  %s4 = ssub.s32 1, %s2
  %s5 = scalar_select 0, %s4, %s2
  $region1: #{tpu_custom_call.1} parent=0
    #allocation2 [shape = 'u8[16384]{0}', space=vmem, size = 0x4000, scoped, tag = 'input window, operand 0']
    #allocation3 [shape = 's32[2]{0}', space=sflag, size = 0x8, scoped, tag = 'scoped memory for tpu_custom_call.1']
    #allocation4 [shape = 's32[2]{0}', space=sflag, size = 0x8, scoped, tag = 'scoped memory for tpu_custom_call.1']
    #allocation5 [shape = 'u8[32768]{0}', space=vmem, size = 0x8000, scoped, tag = 'output window, operand 0']
    %6 = vsyncpa [#allocation3], 0
    %s7 = scalar_lea.sflag [#allocation3], 1
    %8 = vsyncpa %s7, 0
    %9 = vsyncpa [#allocation4], 0
    %s10 = scalar_lea.sflag [#allocation4], 1
    %11 = vsyncpa %s10, 0
    loop: start=0, step=1, limit=5
    $region2: #{tpu_custom_call.1} parent=1 // loop_pre_header
      _
    $region3: #{tpu_custom_call.1} parent=1 // loop_header
      %s13 = sphi 0, %s17
      %p14 = scmp.ge.s32.totalorder %s13, 5
      %s23 = sphi 0, %s25
      %s26 = sphi 0, %s23
      %s27 = sphi 0, %s26
      %s43 = sphi 0, %s27
      %s49 = sphi 0, %s51
      %s52 = sphi 0, %s49
      %s53 = sphi 0, %s52
      %s69 = sphi 0, %s53
    $region4: #{tpu_custom_call.1} parent=1 // loop_header_branch
      %16 = sbr.rel (%p14) target = $region8
    $region5: #{tpu_custom_call.1} parent=1 // loop_body
      %s18 = ssub.s32 %s13, 1
      %s19 = ssub.s32 %s13, 2
      %s20 = sadd.s32 %s13, 1
      %s21 = ssub.s32 %s13, %s20
      %p22 = scmp.eq.s32.totalorder %s21, 0
      %s24 = sadd.s32 %s23, 1
      %s25 = scalar_select %p22, %s23, %s24
      %p28 = pneg %p22
      %p29 = scmp.eq.s32.totalorder %s13, 2
      %p30 = por %p28, %p29
      %p31 = scmp.ne.s32.totalorder %s23, %s26
      %p32 = scmp.eq.s32.totalorder %s13, 0
      %p33 = por %p31, %p32
      %p34 = scmp.ne.s32.totalorder %s23, %s26
      %p35 = scmp.eq.s32.totalorder %s18, 2
      %p36 = por %p34, %p35
      %p37 = scmp.ne.s32.totalorder %s26, %s27
      %p38 = scmp.eq.s32.totalorder %s18, 0
      %p39 = por %p37, %p38
      %p40 = scmp.ne.s32.totalorder %s26, %s27
      %p41 = scmp.eq.s32.totalorder %s19, 2
      %p42 = por %p40, %p41
      %p44 = scmp.ne.s32.totalorder %s27, %s43
      %p45 = scmp.eq.s32.totalorder %s19, 0
      %p46 = por %p44, %p45
      %s47 = ssub.s32 %s13, %s20
      %p48 = scmp.eq.s32.totalorder %s47, 0
      %s50 = sadd.s32 %s49, 1
      %s51 = scalar_select %p48, %s49, %s50
      %p54 = pneg %p48
      %p55 = scmp.eq.s32.totalorder %s13, 2
      %p56 = por %p54, %p55
      %p57 = scmp.ne.s32.totalorder %s49, %s52
      %p58 = scmp.eq.s32.totalorder %s13, 0
      %p59 = por %p57, %p58
      %p60 = scmp.ne.s32.totalorder %s49, %s52
      %p61 = scmp.eq.s32.totalorder %s18, 2
      %p62 = por %p60, %p61
      %p63 = scmp.ne.s32.totalorder %s52, %s53
      %p64 = scmp.eq.s32.totalorder %s18, 0
      %p65 = por %p63, %p64
      %p66 = scmp.ne.s32.totalorder %s52, %s53
      %p67 = scmp.eq.s32.totalorder %s19, 2
      %p68 = por %p66, %p67
      %p70 = scmp.ne.s32.totalorder %s53, %s69
      %p71 = scmp.eq.s32.totalorder %s19, 0
      %p72 = por %p70, %p71
      %p73 = scmp.le.s32.totalorder 1, %s13
      %p74 = scmp.lt.s32.totalorder %s13, 4
      %p75 = pnand %p73, %p74
      %p76 = pneg %p75
      // Predicated region
      $region9: #{tpu_custom_call.1} parent=5 // pred_check
        _
      $region10: #{tpu_custom_call.1} parent=5 // pred_check_branch
        %78 = sbr.rel (%p75) target = $region12
      $region11: #{tpu_custom_call.1} parent=5 // pred_region
        %s79 = ssub.s32 %s13, 1
      $region12: #{tpu_custom_call.1} parent=5 // pred_fallthru
        _
      %p80 = scmp.lt.s32.totalorder %s13, 3
      // Predicated region
      $region13: #{tpu_custom_call.1} parent=5 // pred_check
        %p81 = pneg %p80
      $region14: #{tpu_custom_call.1} parent=5 // pred_check_branch
        %83 = sbr.rel (%p81) target = $region16
      $region15: #{tpu_custom_call.1} parent=5 // pred_region
        // Predicated region
        $region17: #{tpu_custom_call.1} parent=15 // pred_check
          %p84 = pneg %p33
        $region18: #{tpu_custom_call.1} parent=15 // pred_check_branch
          %86 = sbr.rel (%p84) target = $region20
        $region19: #{tpu_custom_call.1} parent=15 // pred_region
          %s87 = sand.u32 %s23, 1
          %s88 = scalar_lea.sflag [#allocation3], %s87
          %s89 = sand.u32 %s23, 1
          %s90 = smul.addr %s89, 16
          %s91 = scalar_lea.vmem [#allocation2], %s90
          %s92 = smul.u32 2, %s13
          %s93 = ssub.s32 5, %s92
          %p94 = scmp.lt.s32.totalorder %s93, 2
          %s95 = scalar_select %p94, %s93, 2
          %s96 = smul.u32 128, %s95
          %s98 = ssub.s32 256, %s96
          %99 = vsyncadd %s88, %s98
          %p100 = scmp.ne.s32.totalorder 0, %s96
          %s101 = smul.addr %s92, 128
          %s102 = scalar_lea.hbm %s0, %s101
          %s103 = smul.u32 8, %s95
          %s104 = sshll.u32 %s91, 4
          %s105 = int_to_ptr.vmem [resolvable:$true] %s104
          %s106 = sshll.u32 %s103, 4
          %110 = dma.hbm_to_vmem [thread:$0]  (%p100), %s102, %s106, %s105, %s88, 128, 128, 8
        $region20: #{tpu_custom_call.1} parent=15 // pred_fallthru
          _
      $region16: #{tpu_custom_call.1} parent=5 // pred_fallthru
        _
      %p111 = scmp.le.s32.totalorder 1, %s13
      %p112 = scmp.lt.s32.totalorder %s13, 4
      %p113 = pnand %p111, %p112
      %p114 = pneg %p113
      // Predicated region
      $region21: #{tpu_custom_call.1} parent=5 // pred_check
        _
      $region22: #{tpu_custom_call.1} parent=5 // pred_check_branch
        %116 = sbr.rel (%p113) target = $region24
      $region23: #{tpu_custom_call.1} parent=5 // pred_region
        %s117 = ssub.s32 %s13, 1
        %s118 = sand.u32 %s26, 1
        %s119 = scalar_lea.sflag [#allocation3], %s118
        %s120 = sand.u32 %s26, 1
        %s121 = smul.addr %s120, 16
        %s122 = scalar_lea.vmem [#allocation2], %s121
        // Predicated region
        $region25: #{tpu_custom_call.1} parent=23 // pred_check
          %p123 = pneg %p39
        $region26: #{tpu_custom_call.1} parent=23 // pred_check_branch
          %125 = sbr.rel (%p123) target = $region28
        $region27: #{tpu_custom_call.1} parent=23 // pred_region
          %126 = dma.done %s119, 256
        $region28: #{tpu_custom_call.1} parent=23 // pred_fallthru
          _
        %s127 = sand.u32 %s26, 1
        %s128 = scalar_lea.sflag [#allocation3], %s127
        %s129 = sand.u32 %s26, 1
        %s130 = smul.addr %s129, 16
        %s131 = scalar_lea.vmem [#allocation2], %s130
        %p132 = pneg %p39
        %p133 = pneg %p36
        %p134 = pneg %p65
        %p135 = pneg %p62
        %s136 = sand.u32 %s52, 1
        %s137 = scalar_lea.sflag [#allocation4], %s136
        %s138 = sand.u32 %s52, 1
        %s139 = smul.addr %s138, 32
        %s140 = scalar_lea.vmem [#allocation5], %s139
        %s141 = smul.u32 2, %s18
        %s142 = ssub.s32 5, %s141
        %p143 = scmp.lt.s32.totalorder %s142, 2
        %s144 = scalar_select %p143, %s142, 2
        %s145 = smul.u32 128, %s144
        %s146 = smul.u32 2, %s18
        %s147 = ssub.s32 5, %s146
        %p148 = scmp.lt.s32.totalorder %s147, 2
        %s149 = scalar_select %p148, %s147, 2
        %s150 = smul.u32 128, %s149
        %s151 = smul.u32 %s150, 2
        %v152 = vld [vmem:[%s122] sm:$0xff]
        %v153 = vld [vmem:[%s122 + $0x8] sm:$0xff]
        %v154 = vand.u32 2147483647, %v152
        %v155 = vand.u32 2147483647, %v153
        %vm156 = vcmp.gt.f32.partialorder %v154, 4.539993e-05
        %vm157 = vcmp.gt.f32.partialorder %v155, 4.539993e-05
        %v158 = vadd.f32 %v154, 1e-06
        %v159 = vadd.f32 %v155, 1e-06
        %v160 = vlog2.pop %v158
        %v161 = vmul.f32 %v160, 0.6931472
        %v162 = vlog2.pop %v159
        %v163 = vmul.f32 %v162, 0.6931472
        %v164 = vmul.f32 %v161, 0.1
        %v165 = vmul.f32 %v163, 0.1
        %v166 = vsel %vm156, %v164, -1.0
        %v167 = vsel %vm157, %v165, -1.0
        %vm168 = vcmp.gt.f32.partialorder %v152, 0.0
        %vm169 = vcmp.gt.f32.partialorder %v153, 0.0
        %v170 = vsel %vm168, 1.0, -1.0
        %v171 = vsel %vm169, 1.0, -1.0
        %v172 = vmul.f32 %v152, 22026.465
        %v173 = vmul.f32 %v153, 22026.465
        %v174 = vsel %vm156, %v170, %v172
        %v175 = vsel %vm157, %v171, %v173
        %176 = vst [vmem:[%s140] sm:$0xff] %v166
        %177 = vst [vmem:[%s140 + $0x10] sm:$0xff] %v167
        %178 = vst [vmem:[%s140 + $0x8] sm:$0xff] %v174
        %179 = vst [vmem:[%s140 + $0x18] sm:$0xff] %v175
        %s180 = sand.u32 %s52, 1
        %s181 = scalar_lea.sflag [#allocation4], %s180
        %s182 = sand.u32 %s52, 1
        %s183 = smul.addr %s182, 32
        %s184 = scalar_lea.vmem [#allocation5], %s183
        // Predicated region
        $region29: #{tpu_custom_call.1} parent=23 // pred_check
          %p185 = pneg %p62
        $region30: #{tpu_custom_call.1} parent=23 // pred_check_branch
          %187 = sbr.rel (%p185) target = $region32
        $region31: #{tpu_custom_call.1} parent=23 // pred_region
          %s188 = smul.u32 2, %s18
          %s189 = ssub.s32 5, %s188
          %p190 = scmp.lt.s32.totalorder %s189, 2
          %s191 = scalar_select %p190, %s189, 2
          %s192 = smul.u32 128, %s191
          %s193 = smul.u32 %s192, 2
          %s195 = ssub.s32 512, %s193
          %196 = vsyncadd %s181, %s195
          %p197 = scmp.ne.s32.totalorder 0, %s193
          %s198 = smul.addr %s188, 2
          %s199 = smul.addr %s198, 128
          %s200 = scalar_lea.hbm %s1, %s199
          %s201 = smul.u32 16, %s191
          %s202 = sshll.u32 %s184, 4
          %s203 = int_to_ptr.vmem [resolvable:$true] %s202
          %s204 = sshll.u32 %s201, 4
          %208 = dma.vmem_to_hbm [thread:$0]  (%p197), %s203, %s204, %s200, %s181, 256, 256, 16
        $region32: #{tpu_custom_call.1} parent=23 // pred_fallthru
          _
      $region24: #{tpu_custom_call.1} parent=5 // pred_fallthru
        _
      %p209 = scmp.le.s32.totalorder 2, %s13
      // Predicated region
      $region33: #{tpu_custom_call.1} parent=5 // pred_check
        %p210 = pneg %p209
      $region34: #{tpu_custom_call.1} parent=5 // pred_check_branch
        %212 = sbr.rel (%p210) target = $region36
      $region35: #{tpu_custom_call.1} parent=5 // pred_region
        %s213 = ssub.s32 %s13, 2
        // Predicated region
        $region37: #{tpu_custom_call.1} parent=35 // pred_check
          %p214 = pneg %p68
        $region38: #{tpu_custom_call.1} parent=35 // pred_check_branch
          %216 = sbr.rel (%p214) target = $region40
        $region39: #{tpu_custom_call.1} parent=35 // pred_region
          %s217 = sand.u32 %s53, 1
          %s218 = scalar_lea.sflag [#allocation4], %s217
          %s219 = sand.u32 %s53, 1
          %s220 = smul.addr %s219, 32
          %s221 = scalar_lea.vmem [#allocation5], %s220
          %222 = dma.done %s218, 512
        $region40: #{tpu_custom_call.1} parent=35 // pred_fallthru
          _
      $region36: #{tpu_custom_call.1} parent=5 // pred_fallthru
        _
    $region6: #{tpu_custom_call.1} parent=1 // loop_footer
      %s17 = sadd.s32 1, %s13
    $region7: #{tpu_custom_call.1} parent=1 // loop_footer_branch
      %12 = sbr.rel target = $region3
    $region8: #{tpu_custom_call.1} parent=1 // loop_exit
      _
    %223 = vsyncpa [#allocation3], 1
    %s224 = scalar_lea.sflag [#allocation3], 1
    %225 = vsyncpa %s224, 1
    %226 = vsyncpa [#allocation4], 1
    %s227 = scalar_lea.sflag [#allocation4], 1
    %228 = vsyncpa %s227, 1

</llo_original>
